<compile_context>
chip_gen: v5e
topology: v5e:2x2
jax: 0.10.0
libtpu: 0.0.40
codegen_flags: <defaults>
</compile_context>

<pallas_src>
import functools

import jax
import jax.numpy as jnp
from jax.experimental import pallas as pl
from jax.experimental.pallas import tpu as pltpu


_VMEM_LIMIT_BYTES = 32 * 1024 * 1024   # raise v5e's 16 MiB default; safe on v6e/v7x
_TILE_BYTES_BUDGET = 2 * 1024 * 1024   # per-input tile target (0.5-2 MiB sweet spot)
_MIN_SUBLANE = {4: 8, 2: 16, 1: 32}    # dtype-aware second-to-last block multiple


# ----------------------------------------------------------------------------
# Kernels
# ----------------------------------------------------------------------------
def _rmse_partial_sum_kernel(p_ref, t_ref, o_ref, *, eps):
    """One grid step = one row-block. Writes the block's sum of
    sqrt((p-t)^2 + eps) into its own (8, 128) output block (broadcast scalar),
    so there is no cross-step state and every grid axis is 'parallel'."""
    p = p_ref[...].astype(jnp.float32)
    t = t_ref[...].astype(jnp.float32)
    d = p - t
    loss = jnp.sqrt(d * d + eps)                 # elementwise, as in the module
    # One cross-lane reduce per (large) block — negligible vs. the block DMA.
    s = jnp.sum(jnp.sum(loss, axis=1, keepdims=True), axis=0, keepdims=True)  # (1,1)
    o_ref[...] = jnp.broadcast_to(s, (8, 128))   # pad to a legal (8,128) tile


def _rmse_elementwise_kernel(p_ref, t_ref, o_ref, *, eps):
    """reduction='none': per-element sqrt((p-t)^2 + eps), output in input dtype."""
    p = p_ref[...].astype(jnp.float32)
    t = t_ref[...].astype(jnp.float32)
    d = p - t
    o_ref[...] = jnp.sqrt(d * d + eps).astype(o_ref.dtype)


# ----------------------------------------------------------------------------
# Tiling helper
# ----------------------------------------------------------------------------
def _pick_tile_r(R, C, itemsize):
    """Largest legal row-block: full R if the whole array fits the budget,
    else the biggest divisor of R that is a multiple of the dtype's sublane
    tile and keeps the per-input tile under the budget."""
    if R * C * itemsize <= _TILE_BYTES_BUDGET:
        return R
    step = _MIN_SUBLANE.get(itemsize, 8)
    max_rows = max(step, _TILE_BYTES_BUDGET // max(1, C * itemsize))
    best = None
    r = step
    while r <= min(R, max_rows):
        if R % r == 0:
            best = r
        r += step
    if best is None:
        # TODO(synk): no aligned divisor of R found; fall back to one
        # full-array block (always legal, but VMEM-heavy for huge odd shapes).
        best = R
    return best


# ----------------------------------------------------------------------------
# Wrapper
# ----------------------------------------------------------------------------
def rmse_loss(predictions, targets, *, reduction="mean", eps=1e-9, tile_r=None):
    assert predictions.shape == targets.shape
    orig_shape = predictions.shape
    out_dtype = predictions.dtype

    # Flatten to 2-D (rows, cols): last dim stays the lane axis and the column
    # block is always the full dim (legal for any width, lane-dense DMAs).
    if predictions.ndim <= 1:
        p2 = predictions.reshape(1, -1)
        t2 = targets.reshape(1, -1)
    else:
        p2 = predictions.reshape(-1, predictions.shape[-1])
        t2 = targets.reshape(-1, targets.shape[-1])
    R, C = p2.shape
    itemsize = jnp.dtype(p2.dtype).itemsize

    if tile_r is None:
        tile_r = _pick_tile_r(R, C, itemsize)
    assert R % tile_r == 0, "tile_r must divide the (flattened) row count"
    num_blocks = R // tile_r

    in_spec = pl.BlockSpec((tile_r, C), lambda i: (i, 0))
    compiler_params = pltpu.CompilerParams(
        dimension_semantics=("parallel",),
        vmem_limit_bytes=_VMEM_LIMIT_BYTES,
    )

    if reduction == "none":
        out = pl.pallas_call(
            functools.partial(_rmse_elementwise_kernel, eps=eps),
            out_shape=jax.ShapeDtypeStruct((R, C), out_dtype),
            grid_spec=pltpu.PrefetchScalarGridSpec(
                num_scalar_prefetch=0,
                grid=(num_blocks,),
                in_specs=[in_spec, in_spec],
                out_specs=pl.BlockSpec((tile_r, C), lambda i: (i, 0)),
            ),
            compiler_params=compiler_params,
        )(p2, t2)
        return out.reshape(orig_shape)

    if reduction not in ("mean", "sum"):
        raise ValueError(f"unknown reduction: {reduction}")

    # Per-block partial sums, padded to (8, 128) blocks so the output BlockSpec
    # is tiling-legal and every grid step owns a distinct output block.
    partials = pl.pallas_call(
        functools.partial(_rmse_partial_sum_kernel, eps=eps),
        out_shape=jax.ShapeDtypeStruct((num_blocks * 8, 128), jnp.float32),
        grid_spec=pltpu.PrefetchScalarGridSpec(
            num_scalar_prefetch=0,
            grid=(num_blocks,),
            in_specs=[in_spec, in_spec],
            out_specs=pl.BlockSpec((8, 128), lambda i: (i, 0)),
        ),
        compiler_params=compiler_params,
    )(p2, t2)

    # One scalar per block lives at [8*i, 0]; tiny final reduce in plain JAX.
    total = jnp.sum(partials[::8, 0])
    if reduction == "mean":
        total = total / float(R * C)
    return total


# ----------------------------------------------------------------------------
# Demo / correctness check
# ----------------------------------------------------------------------------
if __name__ == "__main__":
    eps = 1e-9

    # Case 1: shape matching the FB3 use-case — (batch, num_targets)
    kp, kt = jax.random.split(jax.random.PRNGKey(0))
    B, T = 16, 6
    preds_s = jax.random.normal(kp, (B, T), dtype=jnp.float32)
    targs_s = jax.random.normal(kt, (B, T), dtype=jnp.float32)

    ref_none_s = jnp.sqrt((preds_s - targs_s) ** 2 + eps)
    loss_mean = jax.block_until_ready(rmse_loss(preds_s, targs_s, reduction="mean", eps=eps))
    loss_sum = jax.block_until_ready(rmse_loss(preds_s, targs_s, reduction="sum", eps=eps))
    loss_none = jax.block_until_ready(rmse_loss(preds_s, targs_s, reduction="none", eps=eps))

    assert jnp.allclose(loss_mean, jnp.mean(ref_none_s), rtol=1e-5, atol=1e-6), (loss_mean, jnp.mean(ref_none_s))
    assert jnp.allclose(loss_sum, jnp.sum(ref_none_s), rtol=1e-5, atol=1e-4), (loss_sum, jnp.sum(ref_none_s))
    assert jnp.allclose(loss_none, ref_none_s, rtol=1e-6, atol=1e-6)

    # Case 2: larger 2-D tensor to exercise the multi-block (parallel-grid) path.
    kp2, kt2 = jax.random.split(jax.random.PRNGKey(0))
    R, C = 256, 512
    preds = jax.random.normal(kp2, (R, C), dtype=jnp.float32)
    targs = jax.random.normal(kt2, (R, C), dtype=jnp.float32)

    ref_none = jnp.sqrt((preds - targs) ** 2 + eps)
    loss_mean2 = jax.block_until_ready(rmse_loss(preds, targs, reduction="mean", eps=eps, tile_r=64))
    loss_sum2 = jax.block_until_ready(rmse_loss(preds, targs, reduction="sum", eps=eps, tile_r=64))
    loss_none2 = jax.block_until_ready(rmse_loss(preds, targs, reduction="none", eps=eps, tile_r=64))

    assert jnp.allclose(loss_mean2, jnp.mean(ref_none), rtol=1e-5, atol=1e-6), (loss_mean2, jnp.mean(ref_none))
    assert jnp.allclose(loss_sum2, jnp.sum(ref_none), rtol=1e-5, atol=1e-3), (loss_sum2, jnp.sum(ref_none))
    assert jnp.allclose(loss_none2, ref_none, rtol=1e-6, atol=1e-6)

    print("KERNEL_OK")
</pallas_src>

<mosaic_0001>
module attributes {stable_mosaic.version = 11 : i64} {
  func.func @_rmse_partial_sum_kernel(%arg0: i32, %arg1: memref<16x6xf32, #tpu.memory_space<vmem>>, %arg2: memref<16x6xf32, #tpu.memory_space<vmem>>, %arg3: memref<8x128xf32, #tpu.memory_space<vmem>>) attributes {dimension_semantics = [#tpu.dimension_semantics<parallel>], iteration_bounds = array<i64: 1>, scalar_prefetch = 0 : i64, scratch_operands = 0 : i64, tpu.core_type = #tpu.core_type<tc>, window_params = [{transform_indices = @transform_0, window_bounds = array<i64: 16, 6>}, {transform_indices = @transform_1, window_bounds = array<i64: 16, 6>}, {transform_indices = @transform_2, window_bounds = array<i64: 8, 128>}]} {
    %c0 = arith.constant 0 : index
    %c0_0 = arith.constant 0 : index
    %0 = vector.load %arg1[%c0, %c0_0] : memref<16x6xf32, #tpu.memory_space<vmem>>, vector<16x6xf32>
    %c0_1 = arith.constant 0 : index
    %c0_2 = arith.constant 0 : index
    %1 = vector.load %arg2[%c0_1, %c0_2] : memref<16x6xf32, #tpu.memory_space<vmem>>, vector<16x6xf32>
    %2 = arith.subf %0, %1 : vector<16x6xf32>
    %3 = arith.mulf %2, %2 : vector<16x6xf32>
    %cst = arith.constant 9.99999971E-10 : f32
    %4 = vector.broadcast %cst : f32 to vector<16x6xf32>
    %5 = arith.addf %3, %4 : vector<16x6xf32>
    %6 = math.sqrt %5 : vector<16x6xf32>
    %cst_3 = arith.constant dense<0.000000e+00> : vector<16xf32>
    %7 = vector.multi_reduction <add>, %6, %cst_3 [1] : vector<16x6xf32> to vector<16xf32>
    %8 = vector.shape_cast %7 : vector<16xf32> to vector<16x1xf32>
    %cst_4 = arith.constant dense<0.000000e+00> : vector<1xf32>
    %9 = vector.multi_reduction <add>, %8, %cst_4 [0] : vector<16x1xf32> to vector<1xf32>
    %10 = vector.shape_cast %9 : vector<1xf32> to vector<1x1xf32>
    %11 = vector.shape_cast %10 : vector<1x1xf32> to vector<1x1xf32>
    %12 = vector.broadcast %11 : vector<1x1xf32> to vector<8x128xf32>
    %c0_5 = arith.constant 0 : index
    %c0_6 = arith.constant 0 : index
    %13 = vector.load %arg3[%c0_5, %c0_6] : memref<8x128xf32, #tpu.memory_space<vmem>>, vector<8x128xf32>
    tpu.vector_store %arg3[%c0_5, %c0_6], %12 {strides = array<i32>} : memref<8x128xf32, #tpu.memory_space<vmem>>, vector<8x128xf32>,
    return
  }
  func.func @transform_0(%arg0: i32) -> (i32, i32) {
    %c0_i32 = arith.constant 0 : i32
    %c0_i32_0 = arith.constant 0 : i32
    return %arg0, %c0_i32 : i32, i32
  }
  func.func @transform_1(%arg0: i32) -> (i32, i32) {
    %c0_i32 = arith.constant 0 : i32
    %c0_i32_0 = arith.constant 0 : i32
    return %arg0, %c0_i32 : i32, i32
  }
  func.func @transform_2(%arg0: i32) -> (i32, i32) {
    %c0_i32 = arith.constant 0 : i32
    %c0_i32_0 = arith.constant 0 : i32
    return %arg0, %c0_i32 : i32, i32
  }
}

</mosaic_0001>

<llo_original>
// kernel: tpu_custom_call.1
$region0: #{tpu_custom_call.1}
  #allocation0 [shape = 'u32[]', space=smem, size = 0x4, offset = 0x4, fixed_abs, tag = 'smem constant byte address 0x4 - core index']
  #allocation1 [shape = 'u32[72,128]{1,0:T(1,128)}', space=vmem, size = 0x9000, scoped, tag = 'internal scratch']
  %s0 = inlined_call_operand.vmem [shape: f32[16,6], index: 0, kind: input, shape index: {}]
  %s1 = inlined_call_operand.vmem [shape: f32[16,6], index: 1, kind: input, shape index: {}]
  %s2 = inlined_call_operand.hbm [shape: f32[8,128], index: 2, kind: output, shape index: {}]
  %s3 = sld [smem:[#allocation0]]
  $region18: #{tpu_custom_call.1} parent=0
    _
  %s5 = ssub.s32 1, %s3
  %s6 = scalar_select 0, %s5, %s3
  $region1: #{tpu_custom_call.1} parent=0
    #allocation2 [shape = 'u8[4096]{0}', space=vmem, size = 0x1000, scoped, tag = 'output window, operand 0, single buffered']
    #allocation3 [shape = 's32[1]{0}', space=sflag, size = 0x4, scoped, tag = 'scoped memory for tpu_custom_call.1']
    %7 = vsyncpa [#allocation3], 0
    // Predicated region
    $region2: #{tpu_custom_call.1} parent=1 // pred_check
      _
    $region3: #{tpu_custom_call.1} parent=1 // pred_check_branch
      %9 = sbr.rel (0) target = $region5
    $region4: #{tpu_custom_call.1} parent=1 // pred_region
      _
    $region5: #{tpu_custom_call.1} parent=1 // pred_fallthru
      _
    // Predicated region
    $region6: #{tpu_custom_call.1} parent=1 // pred_check
      _
    $region7: #{tpu_custom_call.1} parent=1 // pred_check_branch
      %11 = sbr.rel (0) target = $region9
    $region8: #{tpu_custom_call.1} parent=1 // pred_region
      _
    $region9: #{tpu_custom_call.1} parent=1 // pred_fallthru
      _
    %v12 = vld [vmem:[%s0] sm:$0xff]
    %v13 = vld [vmem:[%s0 + $0x8] sm:$0xff]
    %v14 = vld [vmem:[%s1] sm:$0xff]
    %v15 = vld [vmem:[%s1 + $0x8] sm:$0xff]
    %v16 = vsub.f32 %v12, %v14
    %v17 = vsub.f32 %v13, %v15
    %v18 = vmul.f32 %v16, %v16
    %v19 = vmul.f32 %v17, %v17
    %v20 = vadd.f32 %v18, 1e-09
    %v21 = vadd.f32 %v19, 1e-09
    %v22 = vrsqrt.pop %v20
    %v23 = vmul.f32 %v22, %v20
    %v24 = vmul.f32 %v23, %v22
    %v25 = vmul.f32 0.5, %v24
    %v26 = vsub.f32 1.5, %v25
    %v27 = vmul.f32 %v22, %v26
    %v28 = vmul.f32 %v20, %v27
    %vm29 = vcmp.eq.f32.partialorder %v20, inf
    %v30 = vsel %vm29, %v20, %v28
    %vm31 = vcmp.eq.f32.partialorder %v20, 0.0
    %v32 = vand.u32 %v20, 2147483648
    %v33 = vsel %vm31, %v32, %v30
    %v34 = vrsqrt.pop %v21
    %v35 = vmul.f32 %v34, %v21
    %v36 = vmul.f32 %v35, %v34
    %v37 = vmul.f32 0.5, %v36
    %v38 = vsub.f32 1.5, %v37
    %v39 = vmul.f32 %v34, %v38
    %v40 = vmul.f32 %v21, %v39
    %vm41 = vcmp.eq.f32.partialorder %v21, inf
    %v42 = vsel %vm41, %v21, %v40
    %vm43 = vcmp.eq.f32.partialorder %v21, 0.0
    %v44 = vand.u32 %v21, 2147483648
    %v45 = vsel %vm43, %v44, %v42
    %vm46 = vcmask 48128
    %v47 = vsel %vm46, %v33, 0.0
    %48 = vadd.xlane.f32.xlu0 %v47
    %v49 = vpop.xlane.xlu0 %48
    %v50 = vsel %vm46, %v45, 0.0
    %51 = vadd.xlane.f32.xlu0 %v50
    %v52 = vpop.xlane.xlu0 %51
    %v53 = vadd.f32 %v49, %v52
    %v54 = vrot.slane %v53, 4
    %v55 = vadd.f32 %v53, %v54
    %v56 = vrot.slane %v55, 2
    %v57 = vadd.f32 %v55, %v56
    %v58 = vrot.slane %v57, 1
    %v59 = vadd.f32 %v57, %v58
    %60 = vst [vmem:[#allocation2] sm:$0xff] %v59
    // Predicated region
    $region10: #{tpu_custom_call.1} parent=1 // pred_check
      _
    $region11: #{tpu_custom_call.1} parent=1 // pred_check_branch
      %62 = sbr.rel (0) target = $region13
    $region12: #{tpu_custom_call.1} parent=1 // pred_region
      %64 = vsyncadd [#allocation3], 0
      %s66 = sshll.u32 [#allocation2], 4
      %s67 = int_to_ptr.vmem [resolvable:$true] %s66
      %s68 = sshll.u32 %s2, 4
      %s69 = int_to_ptr.hbm [resolvable:$true] %s68
      %71 = dma.vmem_to_hbm [thread:$0]  %s67, 128, %s69, [#allocation3]
    $region13: #{tpu_custom_call.1} parent=1 // pred_fallthru
      _
    // Predicated region
    $region14: #{tpu_custom_call.1} parent=1 // pred_check
      _
    $region15: #{tpu_custom_call.1} parent=1 // pred_check_branch
      %73 = sbr.rel (0) target = $region17
    $region16: #{tpu_custom_call.1} parent=1 // pred_region
      %75 = dma.done [#allocation3], 128
    $region17: #{tpu_custom_call.1} parent=1 // pred_fallthru
      _
    %76 = vsyncpa [#allocation3], 1

</llo_original>
